<compile_context>
chip_gen: v7x
topology: tpu7x:2x2x1
jax: 0.10.0
libtpu: 0.0.40
codegen_flags: <defaults>
</compile_context>

<pallas_src>
import functools

import jax
import jax.numpy as jnp
from jax import lax
from jax.experimental import pallas as pl
from jax.experimental.pallas import tpu as pltpu

# Small, module-consistent shapes
SEQ = 8        # L
BATCH = 2      # N
D_MODEL = 32   # E
N_HEAD = 4     # H
HEAD_DIM = D_MODEL // N_HEAD
EPS = 1e-5


# ----------------------------------------------------------------------------
# Packed parameter slab layout (shared by the wrapper and the kernel).
# All params are padded on the lane axis to W = 4*E (=128) columns and stacked
# on the sublane axis.  Everything below is static Python int arithmetic.
# ----------------------------------------------------------------------------
def _slab_layout(E, H, NL):
    W = 4 * E                     # slab lane width (128 for E=32)
    layout = {}
    r = [0]

    def add(name, rows, cols):
        layout[name] = (r[0], rows, cols)
        r[0] += rows

    add("w_in",   E, 3 * E)       # in-projection (Q cols pre-scaled)
    add("w_out",  E, E)
    add("w_fc",   E, 4 * E)
    add("w_proj", 4 * E, E)
    add("ln1_g", 1, E)
    add("ln1_b", 1, E)
    add("ln2_g", 1, E)
    add("ln2_b", 1, E)
    add("b_in",  1, 3 * E)        # (Q cols pre-scaled)
    add("b_out", 1, E)
    add("b_fc",  1, 4 * E)
    add("b_proj", 1, E)
    add("head_mask",  H * NL, E)  # 1.0 inside own head's column block else 0.0
    add("batch_bias", H * NL, NL) # 0.0 same-batch else -1e30
    return layout, r[0], W


def _layernorm_fused(v, g, b):
    """LayerNorm with two *independent* reductions (co-issue in the XLU slot)."""
    inv_n = 1.0 / v.shape[-1]
    s1 = jnp.sum(v, axis=-1, keepdims=True)
    s2 = jnp.sum(v * v, axis=-1, keepdims=True)
    mu = s1 * inv_n
    var = s2 * inv_n - mu * mu
    return (v - mu) * lax.rsqrt(var + EPS) * g + b


def _block_kernel(x_ref, slab_ref, o_ref, *, n_head, seq_len):
    del seq_len  # batch structure is encoded in the precomputed batch_bias
    x = x_ref[...]                       # (NL, E) f32, batches flattened on sublanes
    NL, E = x.shape
    H = n_head
    layout, _, _ = _slab_layout(E, H, NL)

    def carve(name):
        r0, nrows, ncols = layout[name]
        return slab_ref[r0:r0 + nrows, 0:ncols]   # static slice -> cheap sub-load

    # ---- step 1: LN1 + fused QKV projection over all (batch, seq) rows -----
    h1 = _layernorm_fused(x, carve("ln1_g"), carve("ln1_b"))
    qkv = jnp.dot(h1, carve("w_in"), preferred_element_type=jnp.float32) + carve("b_in")
    # 1/sqrt(head_dim) is folded into the Q columns of w_in / b_in (wrapper).
    q = qkv[:, :E]
    k = qkv[:, E:2 * E]
    v = qkv[:, 2 * E:]

    head_mask = carve("head_mask")       # (H*NL, E)  precomputed 1/0
    batch_bias = carve("batch_bias")     # (H*NL, NL) precomputed 0/-1e30

    # ---- all heads + all batches with two MXU ops ---------------------------
    # Replicate Q once per head along the sublane axis, zero every replica
    # outside its own head's column block, then contract against K over E:
    # scores[h*NL + i, j] = sum_d q[i, h*dh+d] * k[j, h*dh+d]
    q_rep = jnp.tile(q, (H, 1))                                       # (H*NL, E)
    q_masked = q_rep * head_mask                                      # one vmul

    s = lax.dot_general(q_masked, k,
                        dimension_numbers=(((1,), (1,)), ((), ())),
                        preferred_element_type=jnp.float32)           # (H*NL, NL)
    s = s + batch_bias                                                # one vadd

    # Softmax over the key axis (full last dim -> plain lane reductions).
    m = jnp.max(s, axis=-1, keepdims=True)
    p = jnp.exp(s - m)
    denom = jnp.sum(p, axis=-1, keepdims=True)
    p = p / denom                         # exact divide (tolerance-safe)

    # ctx_big[h*NL + i, e] = sum_j p[h*NL+i, j] * v[j, e]
    ctx_big = jnp.dot(p, v, preferred_element_type=jnp.float32)       # (H*NL, E)
    ctx_big = ctx_big * head_mask
    ctx = ctx_big[0:NL, :]
    for hh in range(1, H):                # static, H-1 cheap VPU adds of full tiles
        ctx = ctx + ctx_big[hh * NL:(hh + 1) * NL, :]

    attn_out = jnp.dot(ctx, carve("w_out"),
                       preferred_element_type=jnp.float32) + carve("b_out")

    # ---- step 2: residual ----------------------------------------------------
    x1 = x + attn_out

    # ---- step 3: LN2 + MLP over all rows at once -----------------------------
    h2 = _layernorm_fused(x1, carve("ln2_g"), carve("ln2_b"))
    f = jnp.dot(h2, carve("w_fc"), preferred_element_type=jnp.float32) + carve("b_fc")
    f = f * jax.nn.sigmoid(1.702 * f)                                  # QuickGELU
    mlp = jnp.dot(f, carve("w_proj"), preferred_element_type=jnp.float32) + carve("b_proj")

    # ---- step 4: residual; single full-block store ---------------------------
    o_ref[...] = x1 + mlp


def _pack_slab(params, *, n_head, seq_len, batch):
    """Pack all weights/biases/LN params + precomputed masks into one f32 slab."""
    (ln1_g, ln1_b, w_in, b_in, w_out, b_out,
     ln2_g, ln2_b, w_fc, b_fc, w_proj, b_proj) = params
    E = w_in.shape[0]
    H = n_head
    L = seq_len
    NL = batch * L
    dh = E // H
    layout, total_rows, W = _slab_layout(E, H, NL)

    # Fold 1/sqrt(head_dim) into the Q columns of the in-projection (removes an
    # (NL, E) VPU multiply from the kernel's serial path).
    qscale = jnp.concatenate(
        [jnp.full((1, E), dh ** -0.5, jnp.float32),
         jnp.ones((1, 2 * E), jnp.float32)], axis=1)
    w_in_s = w_in * qscale
    b_in_s = b_in * qscale

    # Precomputed head block mask and batch attention bias (review item 4).
    row = jnp.arange(H * NL)
    head_mask = ((row // NL)[:, None] == (jnp.arange(E) // dh)[None, :]
                 ).astype(jnp.float32)                                 # (H*NL, E)
    batch_bias = jnp.where(
        ((row % NL) // L)[:, None] == (jnp.arange(NL) // L)[None, :],
        0.0, -1e30).astype(jnp.float32)                                # (H*NL, NL)

    tensors = {
        "w_in": w_in_s, "w_out": w_out, "w_fc": w_fc, "w_proj": w_proj,
        "ln1_g": ln1_g, "ln1_b": ln1_b, "ln2_g": ln2_g, "ln2_b": ln2_b,
        "b_in": b_in_s, "b_out": b_out, "b_fc": b_fc, "b_proj": b_proj,
        "head_mask": head_mask, "batch_bias": batch_bias,
    }
    rows = []
    for name, (_, nrows, ncols) in layout.items():
        t = tensors[name]
        assert t.shape == (nrows, ncols), (name, t.shape, (nrows, ncols))
        rows.append(jnp.pad(t, ((0, 0), (0, W - ncols))))
    slab = jnp.concatenate(rows, axis=0)
    pad_rows = (-total_rows) % 8          # keep sublane-aligned row count
    if pad_rows:
        slab = jnp.pad(slab, ((0, pad_rows), (0, 0)))
    return slab


def residual_attention_block(x_lne, params, *, n_head=N_HEAD):
    """x_lne: (L, N, E) float32 (PyTorch nn.MultiheadAttention convention)."""
    L, N, E = x_lne.shape
    H = n_head
    NL = N * L
    x_flat = jnp.transpose(x_lne, (1, 0, 2)).reshape(NL, E)           # (N*L, E)

    slab = _pack_slab(params, n_head=H, seq_len=L, batch=N)

    kernel = functools.partial(_block_kernel, n_head=H, seq_len=L)

    # Advisory cost estimate so XLA can overlap neighboring HLO with this call.
    flops = 2 * (NL * E * 3 * E            # QKV projection
                 + H * NL * NL * E         # Q.K^T
                 + H * NL * NL * E         # P@V
                 + NL * E * E              # out projection
                 + NL * E * 4 * E          # c_fc
                 + NL * 4 * E * E)         # c_proj
    transcendentals = H * NL * NL + NL * 4 * E + 2 * NL
    bytes_accessed = 4 * (x_flat.size + slab.size + NL * E)

    # Grid-less call: the whole problem (~2 KiB activations + ~180 KiB packed
    # params) lives in VMEM for a single invocation — two input DMAs total,
    # no per-step pipeline overhead.
    # TODO(synk): when scaled to real ViT dims (L~197, E>=768), add a
    # "parallel" grid axis over batch/sequence tiles (v7x has 2 TCs, 64 MiB
    # VMEM) and amortize launch cost across layers via scalar-prefetch /
    # cross-call weight prefetch.
    out = pl.pallas_call(
        kernel,
        out_shape=jax.ShapeDtypeStruct((NL, E), jnp.float32),
        in_specs=[pl.BlockSpec(memory_space=pltpu.MemorySpace.VMEM),
                  pl.BlockSpec(memory_space=pltpu.MemorySpace.VMEM)],
        out_specs=pl.BlockSpec(memory_space=pltpu.MemorySpace.VMEM),
        cost_estimate=pl.CostEstimate(flops=flops,
                                      transcendentals=transcendentals,
                                      bytes_accessed=bytes_accessed),
    )(x_flat, slab)

    return jnp.transpose(out.reshape(N, L, E), (1, 0, 2))             # back to (L, N, E)


def reference_forward(x_lne, params, *, n_head=N_HEAD):
    """Plain-JAX reference mirroring PyTorch semantics, for verification."""
    (ln1_g, ln1_b, w_in, b_in, w_out, b_out,
     ln2_g, ln2_b, w_fc, b_fc, w_proj, b_proj) = params
    L, N, E = x_lne.shape
    dh = E // n_head
    x = jnp.transpose(x_lne, (1, 0, 2))           # (N, L, E)

    def ln(v, g, b):
        mu = jnp.mean(v, axis=-1, keepdims=True)
        var = jnp.mean((v - mu) ** 2, axis=-1, keepdims=True)
        return (v - mu) * lax.rsqrt(var + EPS) * g + b

    h = ln(x, ln1_g, ln1_b)
    qkv = h @ w_in + b_in
    q, k, v = qkv[..., :E] / (dh ** 0.5), qkv[..., E:2 * E], qkv[..., 2 * E:]
    q = q.reshape(N, L, n_head, dh).transpose(0, 2, 1, 3)
    k = k.reshape(N, L, n_head, dh).transpose(0, 2, 1, 3)
    v = v.reshape(N, L, n_head, dh).transpose(0, 2, 1, 3)
    s = jnp.einsum('nhqd,nhkd->nhqk', q, k)
    p = jax.nn.softmax(s, axis=-1)
    ctx = jnp.einsum('nhqk,nhkd->nhqd', p, v).transpose(0, 2, 1, 3).reshape(N, L, E)
    x1 = x + (ctx @ w_out + b_out)
    h2 = ln(x1, ln2_g, ln2_b)
    f = h2 @ w_fc + b_fc
    f = f * jax.nn.sigmoid(1.702 * f)
    out = x1 + (f @ w_proj + b_proj)
    return out.transpose(1, 0, 2)


def make_params(key, d_model=D_MODEL):
    E = d_model
    ks = jax.random.split(key, 8)
    scale = 0.02
    ln1_g = jnp.ones((1, E), jnp.float32)
    ln1_b = jnp.zeros((1, E), jnp.float32)
    ln2_g = jnp.ones((1, E), jnp.float32)
    ln2_b = jnp.zeros((1, E), jnp.float32)
    # in_proj_weight (3E, E) passed transposed -> (E, 3E)
    w_in = scale * jax.random.normal(ks[0], (E, 3 * E), jnp.float32)
    b_in = scale * jax.random.normal(ks[1], (1, 3 * E), jnp.float32)
    # out_proj weight (E, E) transposed -> (E, E)
    w_out = scale * jax.random.normal(ks[2], (E, E), jnp.float32)
    b_out = scale * jax.random.normal(ks[3], (1, E), jnp.float32)
    # c_fc weight (4E, E) transposed -> (E, 4E)
    w_fc = scale * jax.random.normal(ks[4], (E, 4 * E), jnp.float32)
    b_fc = scale * jax.random.normal(ks[5], (1, 4 * E), jnp.float32)
    # c_proj weight (E, 4E) transposed -> (4E, E)
    w_proj = scale * jax.random.normal(ks[6], (4 * E, E), jnp.float32)
    b_proj = scale * jax.random.normal(ks[7], (1, E), jnp.float32)
    return (ln1_g, ln1_b, w_in, b_in, w_out, b_out,
            ln2_g, ln2_b, w_fc, b_fc, w_proj, b_proj)


if __name__ == "__main__":
    key = jax.random.PRNGKey(0)
    kx, kp = jax.random.split(key)
    # PyTorch MHA convention: (seq, batch, d_model)
    x = jax.random.normal(kx, (SEQ, BATCH, D_MODEL), jnp.float32)
    params = make_params(kp)

    out = residual_attention_block(x, params)
    out = jax.block_until_ready(out)

    ref = reference_forward(x, params)
    assert out.shape == (SEQ, BATCH, D_MODEL)
    err = float(jnp.max(jnp.abs(out - ref)))
    assert jnp.allclose(out, ref, atol=2e-4, rtol=2e-4), f"max abs err {err}"

    print("KERNEL_OK")
</pallas_src>

<mosaic_0001>
module attributes {stable_mosaic.version = 11 : i64} {
  func.func @_block_kernel(%arg0: memref<16x32xf32, #tpu.memory_space<vmem>>, %arg1: memref<360x128xf32, #tpu.memory_space<vmem>>, %arg2: memref<16x32xf32, #tpu.memory_space<vmem>>) attributes {dimension_semantics = [], scalar_prefetch = 0 : i64, scratch_operands = 0 : i64, tpu.core_type = #tpu.core_type<tc>} {
    %c0 = arith.constant 0 : index
    %c0_0 = arith.constant 0 : index
    %0 = vector.load %arg0[%c0, %c0_0] : memref<16x32xf32, #tpu.memory_space<vmem>>, vector<16x32xf32>
    %c224 = arith.constant 224 : index
    %c0_1 = arith.constant 0 : index
    %1 = vector.load %arg1[%c224, %c0_1] : memref<360x128xf32, #tpu.memory_space<vmem>>, vector<1x32xf32>
    %c225 = arith.constant 225 : index
    %c0_2 = arith.constant 0 : index
    %2 = vector.load %arg1[%c225, %c0_2] : memref<360x128xf32, #tpu.memory_space<vmem>>, vector<1x32xf32>
    %cst = arith.constant dense<0.000000e+00> : vector<16xf32>
    %3 = vector.multi_reduction <add>, %0, %cst [1] : vector<16x32xf32> to vector<16xf32>
    %4 = vector.shape_cast %3 : vector<16xf32> to vector<16x1xf32>
    %5 = arith.mulf %0, %0 : vector<16x32xf32>
    %cst_3 = arith.constant dense<0.000000e+00> : vector<16xf32>
    %6 = vector.multi_reduction <add>, %5, %cst_3 [1] : vector<16x32xf32> to vector<16xf32>
    %7 = vector.shape_cast %6 : vector<16xf32> to vector<16x1xf32>
    %cst_4 = arith.constant 3.125000e-02 : f32
    %8 = vector.broadcast %cst_4 : f32 to vector<16x1xf32>
    %9 = arith.mulf %4, %8 : vector<16x1xf32>
    %cst_5 = arith.constant 3.125000e-02 : f32
    %10 = vector.broadcast %cst_5 : f32 to vector<16x1xf32>
    %11 = arith.mulf %7, %10 : vector<16x1xf32>
    %12 = arith.mulf %9, %9 : vector<16x1xf32>
    %13 = arith.subf %11, %12 : vector<16x1xf32>
    %14 = vector.broadcast %9 : vector<16x1xf32> to vector<16x32xf32>
    %15 = arith.subf %0, %14 : vector<16x32xf32>
    %cst_6 = arith.constant 9.99999974E-6 : f32
    %16 = vector.broadcast %cst_6 : f32 to vector<16x1xf32>
    %17 = arith.addf %13, %16 : vector<16x1xf32>
    %18 = math.rsqrt %17 : vector<16x1xf32>
    %19 = vector.broadcast %18 : vector<16x1xf32> to vector<16x32xf32>
    %20 = arith.mulf %15, %19 : vector<16x32xf32>
    %21 = vector.broadcast %1 : vector<1x32xf32> to vector<16x32xf32>
    %22 = arith.mulf %20, %21 : vector<16x32xf32>
    %23 = vector.broadcast %2 : vector<1x32xf32> to vector<16x32xf32>
    %24 = arith.addf %22, %23 : vector<16x32xf32>
    %c0_7 = arith.constant 0 : index
    %c0_8 = arith.constant 0 : index
    %25 = vector.load %arg1[%c0_7, %c0_8] : memref<360x128xf32, #tpu.memory_space<vmem>>, vector<32x96xf32>
    %cst_9 = arith.constant dense<0.000000e+00> : vector<16x96xf32>
    %26 = tpu.matmul %24, %25, %cst_9 {dimension_numbers = #tpu.dot_dimension_numbers<[1], [0], [0], [1], [0, 0, 1, 1], [], []>} : vector<16x32xf32>, vector<32x96xf32>, vector<16x96xf32> -> vector<16x96xf32>
    %c228 = arith.constant 228 : index
    %c0_10 = arith.constant 0 : index
    %27 = vector.load %arg1[%c228, %c0_10] : memref<360x128xf32, #tpu.memory_space<vmem>>, vector<1x96xf32>
    %28 = vector.broadcast %27 : vector<1x96xf32> to vector<16x96xf32>
    %29 = arith.addf %26, %28 : vector<16x96xf32>
    %30 = vector.extract_strided_slice %29 {offsets = [0, 0], sizes = [16, 32], strides = [1, 1]} : vector<16x96xf32> to vector<16x32xf32>
    %31 = vector.extract_strided_slice %29 {offsets = [0, 32], sizes = [16, 32], strides = [1, 1]} : vector<16x96xf32> to vector<16x32xf32>
    %32 = vector.extract_strided_slice %29 {offsets = [0, 64], sizes = [16, 32], strides = [1, 1]} : vector<16x96xf32> to vector<16x32xf32>
    %c232 = arith.constant 232 : index
    %c0_11 = arith.constant 0 : index
    %33 = vector.load %arg1[%c232, %c0_11] : memref<360x128xf32, #tpu.memory_space<vmem>>, vector<64x32xf32>
    %c296 = arith.constant 296 : index
    %c0_12 = arith.constant 0 : index
    %34 = vector.load %arg1[%c296, %c0_12] : memref<360x128xf32, #tpu.memory_space<vmem>>, vector<64x16xf32>
    %35 = tpu.concatenate %30, %30, %30, %30 in 0 : vector<16x32xf32>, vector<16x32xf32>, vector<16x32xf32>, vector<16x32xf32> -> vector<64x32xf32>
    %36 = arith.mulf %35, %33 : vector<64x32xf32>
    %cst_13 = arith.constant dense<0.000000e+00> : vector<64x16xf32>
    %37 = tpu.matmul %36, %31, %cst_13 {dimension_numbers = #tpu.dot_dimension_numbers<[1], [1], [0], [0], [0, 0, 1, 0], [], []>} : vector<64x32xf32>, vector<16x32xf32>, vector<64x16xf32> -> vector<64x16xf32>
    %38 = arith.addf %37, %34 : vector<64x16xf32>
    %cst_14 = arith.constant dense<0xFF800000> : vector<64xf32>
    %39 = vector.multi_reduction <maximumf>, %38, %cst_14 [1] : vector<64x16xf32> to vector<64xf32>
    %40 = vector.shape_cast %39 : vector<64xf32> to vector<64x1xf32>
    %41 = vector.broadcast %40 : vector<64x1xf32> to vector<64x16xf32>
    %42 = arith.subf %38, %41 : vector<64x16xf32>
    %43 = math.exp %42 : vector<64x16xf32>
    %cst_15 = arith.constant dense<0.000000e+00> : vector<64xf32>
    %44 = vector.multi_reduction <add>, %43, %cst_15 [1] : vector<64x16xf32> to vector<64xf32>
    %45 = vector.shape_cast %44 : vector<64xf32> to vector<64x1xf32>
    %46 = vector.broadcast %45 : vector<64x1xf32> to vector<64x16xf32>
    %47 = arith.divf %43, %46 : vector<64x16xf32>
    %cst_16 = arith.constant dense<0.000000e+00> : vector<64x32xf32>
    %48 = tpu.matmul %47, %32, %cst_16 {dimension_numbers = #tpu.dot_dimension_numbers<[1], [0], [0], [1], [0, 0, 1, 1], [], []>} : vector<64x16xf32>, vector<16x32xf32>, vector<64x32xf32> -> vector<64x32xf32>
    %49 = arith.mulf %48, %33 : vector<64x32xf32>
    %50 = vector.extract_strided_slice %49 {offsets = [0, 0], sizes = [16, 32], strides = [1, 1]} : vector<64x32xf32> to vector<16x32xf32>
    %51 = vector.extract_strided_slice %49 {offsets = [16, 0], sizes = [16, 32], strides = [1, 1]} : vector<64x32xf32> to vector<16x32xf32>
    %52 = arith.addf %50, %51 : vector<16x32xf32>
    %53 = vector.extract_strided_slice %49 {offsets = [32, 0], sizes = [16, 32], strides = [1, 1]} : vector<64x32xf32> to vector<16x32xf32>
    %54 = arith.addf %52, %53 : vector<16x32xf32>
    %55 = vector.extract_strided_slice %49 {offsets = [48, 0], sizes = [16, 32], strides = [1, 1]} : vector<64x32xf32> to vector<16x32xf32>
    %56 = arith.addf %54, %55 : vector<16x32xf32>
    %c32 = arith.constant 32 : index
    %c0_17 = arith.constant 0 : index
    %57 = vector.load %arg1[%c32, %c0_17] : memref<360x128xf32, #tpu.memory_space<vmem>>, vector<32x32xf32>
    %cst_18 = arith.constant dense<0.000000e+00> : vector<16x32xf32>
    %58 = tpu.matmul %56, %57, %cst_18 {dimension_numbers = #tpu.dot_dimension_numbers<[1], [0], [0], [1], [0, 0, 1, 1], [], []>} : vector<16x32xf32>, vector<32x32xf32>, vector<16x32xf32> -> vector<16x32xf32>
    %c229 = arith.constant 229 : index
    %c0_19 = arith.constant 0 : index
    %59 = vector.load %arg1[%c229, %c0_19] : memref<360x128xf32, #tpu.memory_space<vmem>>, vector<1x32xf32>
    %60 = vector.broadcast %59 : vector<1x32xf32> to vector<16x32xf32>
    %61 = arith.addf %58, %60 : vector<16x32xf32>
    %62 = arith.addf %0, %61 : vector<16x32xf32>
    %c226 = arith.constant 226 : index
    %c0_20 = arith.constant 0 : index
    %63 = vector.load %arg1[%c226, %c0_20] : memref<360x128xf32, #tpu.memory_space<vmem>>, vector<1x32xf32>
    %c227 = arith.constant 227 : index
    %c0_21 = arith.constant 0 : index
    %64 = vector.load %arg1[%c227, %c0_21] : memref<360x128xf32, #tpu.memory_space<vmem>>, vector<1x32xf32>
    %cst_22 = arith.constant dense<0.000000e+00> : vector<16xf32>
    %65 = vector.multi_reduction <add>, %62, %cst_22 [1] : vector<16x32xf32> to vector<16xf32>
    %66 = vector.shape_cast %65 : vector<16xf32> to vector<16x1xf32>
    %67 = arith.mulf %62, %62 : vector<16x32xf32>
    %cst_23 = arith.constant dense<0.000000e+00> : vector<16xf32>
    %68 = vector.multi_reduction <add>, %67, %cst_23 [1] : vector<16x32xf32> to vector<16xf32>
    %69 = vector.shape_cast %68 : vector<16xf32> to vector<16x1xf32>
    %cst_24 = arith.constant 3.125000e-02 : f32
    %70 = vector.broadcast %cst_24 : f32 to vector<16x1xf32>
    %71 = arith.mulf %66, %70 : vector<16x1xf32>
    %cst_25 = arith.constant 3.125000e-02 : f32
    %72 = vector.broadcast %cst_25 : f32 to vector<16x1xf32>
    %73 = arith.mulf %69, %72 : vector<16x1xf32>
    %74 = arith.mulf %71, %71 : vector<16x1xf32>
    %75 = arith.subf %73, %74 : vector<16x1xf32>
    %76 = vector.broadcast %71 : vector<16x1xf32> to vector<16x32xf32>
    %77 = arith.subf %62, %76 : vector<16x32xf32>
    %cst_26 = arith.constant 9.99999974E-6 : f32
    %78 = vector.broadcast %cst_26 : f32 to vector<16x1xf32>
    %79 = arith.addf %75, %78 : vector<16x1xf32>
    %80 = math.rsqrt %79 : vector<16x1xf32>
    %81 = vector.broadcast %80 : vector<16x1xf32> to vector<16x32xf32>
    %82 = arith.mulf %77, %81 : vector<16x32xf32>
    %83 = vector.broadcast %63 : vector<1x32xf32> to vector<16x32xf32>
    %84 = arith.mulf %82, %83 : vector<16x32xf32>
    %85 = vector.broadcast %64 : vector<1x32xf32> to vector<16x32xf32>
    %86 = arith.addf %84, %85 : vector<16x32xf32>
    %c64 = arith.constant 64 : index
    %c0_27 = arith.constant 0 : index
    %87 = vector.load %arg1[%c64, %c0_27] : memref<360x128xf32, #tpu.memory_space<vmem>>, vector<32x128xf32>
    %cst_28 = arith.constant dense<0.000000e+00> : vector<16x128xf32>
    %88 = tpu.matmul %86, %87, %cst_28 {dimension_numbers = #tpu.dot_dimension_numbers<[1], [0], [0], [1], [0, 0, 1, 1], [], []>} : vector<16x32xf32>, vector<32x128xf32>, vector<16x128xf32> -> vector<16x128xf32>
    %c230 = arith.constant 230 : index
    %c0_29 = arith.constant 0 : index
    %89 = vector.load %arg1[%c230, %c0_29] : memref<360x128xf32, #tpu.memory_space<vmem>>, vector<1x128xf32>
    %90 = vector.broadcast %89 : vector<1x128xf32> to vector<16x128xf32>
    %91 = arith.addf %88, %90 : vector<16x128xf32>
    %cst_30 = arith.constant 1.702000e+00 : f32
    %92 = vector.broadcast %cst_30 : f32 to vector<16x128xf32>
    %93 = arith.mulf %92, %91 : vector<16x128xf32>
    %94 = arith.negf %93 : vector<16x128xf32>
    %95 = math.exp %94 : vector<16x128xf32>
    %cst_31 = arith.constant 1.000000e+00 : f32
    %96 = vector.broadcast %cst_31 : f32 to vector<16x128xf32>
    %97 = arith.addf %96, %95 : vector<16x128xf32>
    %98 = arith.divf %96, %97 : vector<16x128xf32>
    %99 = arith.mulf %91, %98 : vector<16x128xf32>
    %c96 = arith.constant 96 : index
    %c0_32 = arith.constant 0 : index
    %100 = vector.load %arg1[%c96, %c0_32] : memref<360x128xf32, #tpu.memory_space<vmem>>, vector<128x32xf32>
    %cst_33 = arith.constant dense<0.000000e+00> : vector<16x32xf32>
    %101 = tpu.matmul %99, %100, %cst_33 {dimension_numbers = #tpu.dot_dimension_numbers<[1], [0], [0], [1], [0, 0, 1, 1], [], []>} : vector<16x128xf32>, vector<128x32xf32>, vector<16x32xf32> -> vector<16x32xf32>
    %c231 = arith.constant 231 : index
    %c0_34 = arith.constant 0 : index
    %102 = vector.load %arg1[%c231, %c0_34] : memref<360x128xf32, #tpu.memory_space<vmem>>, vector<1x32xf32>
    %103 = vector.broadcast %102 : vector<1x32xf32> to vector<16x32xf32>
    %104 = arith.addf %101, %103 : vector<16x32xf32>
    %105 = arith.addf %62, %104 : vector<16x32xf32>
    %c0_35 = arith.constant 0 : index
    %c0_36 = arith.constant 0 : index
    %106 = vector.load %arg2[%c0_35, %c0_36] : memref<16x32xf32, #tpu.memory_space<vmem>>, vector<16x32xf32>
    tpu.vector_store %arg2[%c0_35, %c0_36], %105 {strides = array<i32>} : memref<16x32xf32, #tpu.memory_space<vmem>>, vector<16x32xf32>,
    return
  }
}

</mosaic_0001>

<llo_original>
// kernel: tpu_custom_call.1
$region0: #{tpu_custom_call.1}
  #allocation0 [shape = 'u32[]', space=smem, size = 0x4, offset = 0x4, fixed_abs, tag = 'smem constant byte address 0x4 - core index']
  #allocation1 [shape = 'u32[144,128]{1,0:T(1,128)}', space=vmem, size = 0x12000, scoped, tag = 'internal scratch']
  %s0 = inlined_call_operand.hbm [shape: f32[16,32], index: 0, kind: input, shape index: {}]
  %s1 = inlined_call_operand.hbm [shape: f32[360,128], index: 1, kind: input, shape index: {}]
  %s2 = inlined_call_operand.hbm [shape: f32[16,32], index: 2, kind: output, shape index: {}]
  %s3 = sld [smem:[#allocation0]]
  $region26: #{tpu_custom_call.1} parent=0
    _
  %s5 = ssub.s32 1, %s3
  %s6 = scalar_select 0, %s5, %s3
  $region1: #{tpu_custom_call.1} parent=0
    #allocation2 [shape = 'u8[8192]{0}', space=vmem, size = 0x2000, scoped, tag = 'input window, operand 0, single buffered']
    #allocation3 [shape = 's32[1]{0}', space=sflag, size = 0x4, scoped, tag = 'scoped memory for tpu_custom_call.1']
    #allocation4 [shape = 's32[1]{0}', space=sflag, size = 0x4, scoped, tag = 'scoped memory for tpu_custom_call.1']
    #allocation5 [shape = 'u8[184320]{0}', space=vmem, size = 0x2d000, scoped, tag = 'input window, operand 1, single buffered']
    #allocation6 [shape = 's32[1]{0}', space=sflag, size = 0x4, scoped, tag = 'scoped memory for tpu_custom_call.1']
    #allocation7 [shape = 'u8[8192]{0}', space=vmem, size = 0x2000, scoped, tag = 'output window, operand 0, single buffered']
    %7 = vsyncpa [#allocation3], 0
    %8 = vsyncpa [#allocation6], 0
    %9 = vsyncpa [#allocation4], 0
    // Predicated region
    $region2: #{tpu_custom_call.1} parent=1 // pred_check
      _
    $region3: #{tpu_custom_call.1} parent=1 // pred_check_branch
      %11 = sbr.rel (0) target = $region5
    $region4: #{tpu_custom_call.1} parent=1 // pred_region
      %s13 = ssub.s32 256, 256
      %14 = vsyncadd [#allocation3], %s13
      %s15 = sshll.u32 [#allocation2], 4
      %s16 = int_to_ptr.vmem [resolvable:$true] %s15
      %21 = dma.hbm_to_vmem [thread:$0]  %s0, 256, %s16, [#allocation3], 128, 128, 8
    $region5: #{tpu_custom_call.1} parent=1 // pred_fallthru
      _
    // Predicated region
    $region6: #{tpu_custom_call.1} parent=1 // pred_check
      _
    $region7: #{tpu_custom_call.1} parent=1 // pred_check_branch
      %23 = sbr.rel (0) target = $region9
    $region8: #{tpu_custom_call.1} parent=1 // pred_region
      %s25 = ssub.s32 5760, 5760
      %26 = vsyncadd [#allocation6], %s25
      %s27 = sshll.u32 [#allocation5], 4
      %s28 = int_to_ptr.vmem [resolvable:$true] %s27
      %33 = dma.hbm_to_vmem [thread:$0]  %s1, 5760, %s28, [#allocation6], 128, 128, 8
    $region9: #{tpu_custom_call.1} parent=1 // pred_fallthru
      _
    // Predicated region
    $region10: #{tpu_custom_call.1} parent=1 // pred_check
      _
    $region11: #{tpu_custom_call.1} parent=1 // pred_check_branch
      %35 = sbr.rel (0) target = $region13
    $region12: #{tpu_custom_call.1} parent=1 // pred_region
      %36 = dma.done [#allocation3], 256
    $region13: #{tpu_custom_call.1} parent=1 // pred_fallthru
      _
    // Predicated region
    $region14: #{tpu_custom_call.1} parent=1 // pred_check
      _
    $region15: #{tpu_custom_call.1} parent=1 // pred_check_branch
      %38 = sbr.rel (0) target = $region17
    $region16: #{tpu_custom_call.1} parent=1 // pred_region
      %39 = dma.done [#allocation6], 5760
    $region17: #{tpu_custom_call.1} parent=1 // pred_fallthru
      _
    %v40 = vld [vmem:[#allocation2] sm:$0xff]
    %v41 = vld [vmem:[#allocation2 + $0x8] sm:$0xff]
    %v42 = vld [vmem:[#allocation5 + $0xe0] sm:$0x1]
    %v43 = vld [vmem:[#allocation5 + $0xe1] sm:$0x1]
    %vm44 = vcmask 261120
    %v45 = vsel %vm44, %v40, 0.0
    %46 = vadd.xlane.f32.xlu0 %v45
    %v47 = vpop.xlane.xlu0 %46
    %v48 = vsel %vm44, %v41, 0.0
    %49 = vadd.xlane.f32.xlu0 %v48
    %v50 = vpop.xlane.xlu0 %49
    %v51 = vmul.f32 %v40, %v40
    %v52 = vmul.f32 %v41, %v41
    %v53 = vsel %vm44, %v51, 0.0
    %54 = vadd.xlane.f32.xlu0 %v53
    %v55 = vpop.xlane.xlu0 %54
    %v56 = vsel %vm44, %v52, 0.0
    %57 = vadd.xlane.f32.xlu0 %v56
    %v58 = vpop.xlane.xlu0 %57
    %v59 = vmul.f32 %v47, 0.03125
    %v60 = vmul.f32 %v50, 0.03125
    %v61 = vmul.f32 %v55, 0.03125
    %v62 = vmul.f32 %v58, 0.03125
    %v63 = vmul.f32 %v59, %v59
    %v64 = vmul.f32 %v60, %v60
    %v65 = vsub.f32 %v61, %v63
    %v66 = vsub.f32 %v62, %v64
    %v67 = vsub.f32 %v40, %v59
    %v68 = vsub.f32 %v41, %v60
    %v69 = vadd.f32 %v65, 1e-05
    %v70 = vadd.f32 %v66, 1e-05
    %v71 = vrsqrt.pop %v69
    %v72 = vrsqrt.pop %v70
    %v73 = vmul.f32 %v67, %v71
    %v74 = vmul.f32 %v68, %v72
    %v75 = vlaneseq
    %v76 = vshrl.u32 %v75, 7
    %v77 = vsub.s32 0, %v76
    %v78 = vrot.slane %v42, %v77
    %v79 = vmul.f32 %v73, %v78
    %v80 = vmul.f32 %v74, %v78
    %v81 = vlaneseq
    %v82 = vshrl.u32 %v81, 7
    %v83 = vsub.s32 0, %v82
    %v84 = vrot.slane %v43, %v83
    %v85 = vadd.f32 %v79, %v84
    %v86 = vadd.f32 %v80, %v84
    %v87 = vld [vmem:[#allocation5] sm:$0xff]
    %v88 = vld [vmem:[#allocation5 + $0x8] sm:$0xff]
    %v89 = vld [vmem:[#allocation5 + $0x10] sm:$0xff]
    %v90 = vld [vmem:[#allocation5 + $0x18] sm:$0xff]
    %v91 = vld [vmem:[#allocation5 + $0xe4] sm:$0x1]
    %v92 = vlaneseq
    %v93 = vshrl.u32 %v92, 7
    %v94 = vsub.s32 0, %v93
    %v95 = vrot.slane %v91, %v94
    %v97 = vsel %vm44, %v85, 0
    %v100 = vsel %vm44, %v86, 0
    %102 = vmatprep.subr.mxu0 0.0
    %103 = vmatpush1.msra.mxu0 %v87
    %104 = vmatprep.subr.mxu0 0.0
    %105 = vmatpush1.msra.mxu0 %v88
    %106 = vmatprep.subr.mxu0 0.0
    %107 = vmatpush1.msra.mxu0 %v89
    %108 = vmatprep.subr.mxu0 0.0
    %109 = vmatpush1.msra.mxu0 %v90
    %110 = vmatprep.subr.mxu0 0.0
    %111 = vmatpush1.msra.mxu0 0.0
    %112 = vmatprep.subr.mxu0 0.0
    %113 = vmatpush1.msra.mxu0 0.0
    %114 = vmatprep.subr.mxu0 0.0
    %115 = vmatpush1.msra.mxu0 0.0
    %116 = vmatprep.subr.mxu0 0.0
    %117 = vmatpush1.msra.mxu0 0.0
    %118 = vmatprep.subr.mxu0 0.0
    %119 = vmatpush1.msra.mxu0 0.0
    %120 = vmatprep.subr.mxu0 0.0
    %121 = vmatpush1.msra.mxu0 0.0
    %122 = vmatprep.subr.mxu0 0.0
    %123 = vmatpush1.msra.mxu0 0.0
    %124 = vmatprep.subr.mxu0 0.0
    %125 = vmatpush1.msra.mxu0 0.0
    %126 = vmatprep.subr.mxu0 0.0
    %127 = vmatpush1.msra.mxu0 0.0
    %128 = vmatprep.subr.mxu0 0.0
    %129 = vmatpush1.msra.mxu0 0.0
    %130 = vmatprep.subr.mxu0 0.0
    %131 = vmatpush1.msra.mxu0 0.0
    %132 = vmatprep.subr.mxu0 0.0
    %133 = vmatpush1.msra.mxu0 0.0
    %134 = vmatprep.subr.mxu0 0.0
    %135 = vmatpush1.msra.mxu0 0.0
    %136 = vmatprep.subr.mxu0 0.0
    %137 = vmatpush1.msra.mxu0 0.0
    %138 = vmatprep.subr.mxu0 0.0
    %139 = vmatpush1.msra.mxu0 0.0
    %140 = vmatprep.subr.mxu0 0.0
    %141 = vmatpush1.msra.mxu0 0.0
    %142 = vmatprep.subr.mxu0 0.0
    %143 = vmatpush1.msra.mxu0 0.0
    %144 = vmatprep.subr.mxu0 0.0
    %145 = vmatpush1.msra.mxu0 0.0
    %146 = vmatprep.subr.mxu0 0.0
    %147 = vmatpush1.msra.mxu0 0.0
    %148 = vmatprep.subr.mxu0 0.0
    %149 = vmatpush1.msra.mxu0 0.0
    %150 = vmatprep.subr.mxu0 0.0
    %151 = vmatpush1.msra.mxu0 0.0
    %152 = vmatprep.subr.mxu0 0.0
    %153 = vmatpush1.msra.mxu0 0.0
    %154 = vmatprep.subr.mxu0 0.0
    %155 = vmatpush1.msra.mxu0 0.0
    %156 = vmatprep.subr.mxu0 0.0
    %157 = vmatpush1.msra.mxu0 0.0
    %158 = vmatprep.subr.mxu0 0.0
    %159 = vmatpush1.msra.mxu0 0.0
    %160 = vmatprep.subr.mxu0 0.0
    %161 = vmatpush1.msra.mxu0 0.0
    %162 = vmatprep.subr.mxu0 0.0
    %163 = vmatpush1.msra.mxu0 0.0
    %164 = vmatprep.subr.mxu0 0.0
    %165 = vmatpush1.msra.mxu0 0.0
    %166 = vmatprep.mubr.f32.mxu0 0.0
    %167 = vmatmul.mubr.f32.gmra.mrb[0].mxu0 %v97
    %v168 = vpop.f32.mrb[0].mxu0
    %v169 = vadd.f32 %v95, %v168
    %v170 = vpop.f32.mrb[0].mxu0
    %171 = vmatprep.mubr.f32.mxu0 0.0
    %172 = vmatmul.mubr.f32.gmra.mrb[0].mxu0 %v100
    %v173 = vpop.f32.mrb[0].mxu0
    %v174 = vadd.f32 %v95, %v173
    %v175 = vpop.f32.mrb[0].mxu0
    %176 = vdwg.mxu0
    %v177 = vld [vmem:[#allocation5 + $0xe8] sm:$0xff]
    %v178 = vld [vmem:[#allocation5 + $0xf0] sm:$0xff]
    %v179 = vld [vmem:[#allocation5 + $0xf8] sm:$0xff]
    %v180 = vld [vmem:[#allocation5 + $0x100] sm:$0xff]
    %v181 = vld [vmem:[#allocation5 + $0x108] sm:$0xff]
    %v182 = vld [vmem:[#allocation5 + $0x110] sm:$0xff]
    %v183 = vld [vmem:[#allocation5 + $0x118] sm:$0xff]
    %v184 = vld [vmem:[#allocation5 + $0x120] sm:$0xff]
    %v185 = vld [vmem:[#allocation5 + $0x128] sm:$0xff]
    %v186 = vld [vmem:[#allocation5 + $0x130] sm:$0xff]
    %v187 = vld [vmem:[#allocation5 + $0x138] sm:$0xff]
    %v188 = vld [vmem:[#allocation5 + $0x140] sm:$0xff]
    %v189 = vld [vmem:[#allocation5 + $0x148] sm:$0xff]
    %v190 = vld [vmem:[#allocation5 + $0x150] sm:$0xff]
    %v191 = vld [vmem:[#allocation5 + $0x158] sm:$0xff]
    %v192 = vld [vmem:[#allocation5 + $0x160] sm:$0xff]
    %v193 = vmul.f32 %v169, %v177
    %v194 = vmul.f32 %v174, %v178
    %v195 = vmul.f32 %v169, %v179
    %v196 = vmul.f32 %v174, %v180
    %v197 = vmul.f32 %v169, %v181
    %v198 = vmul.f32 %v174, %v182
    %v199 = vmul.f32 %v169, %v183
    %v200 = vmul.f32 %v174, %v184
    %203 = vrot.lane.b32.xlu0 %v169, 96
    %v204 = vpop.permute.xlu0 %203
    %205 = vrot.lane.b32.xlu0 %v174, 96
    %v206 = vpop.permute.xlu0 %205
    %v208 = vsel %vm44, %v193, 0
    %v211 = vsel %vm44, %v194, 0
    %v214 = vsel %vm44, %v195, 0
    %v217 = vsel %vm44, %v196, 0
    %v220 = vsel %vm44, %v197, 0
    %v223 = vsel %vm44, %v198, 0
    %v226 = vsel %vm44, %v199, 0
    %v229 = vsel %vm44, %v200, 0
    %v231 = vsel %vm44, %v204, 0
    %v233 = vsel %vm44, %v206, 0
    %235 = vmatprep.subr.mxu0 0.0
    %236 = vmatpush1.xpose.msra.mxu0 %v231
    %237 = vmatprep.subr.mxu0 0.0
    %238 = vmatpush1.xpose.msra.mxu0 %v233
    %239 = vmatprep.subr.mxu0 0.0
    %240 = vmatpush1.xpose.msra.mxu0 0.0
    %241 = vmatprep.subr.mxu0 0.0
    %242 = vmatpush1.xpose.msra.mxu0 0.0
    %243 = vmatprep.subr.mxu0 0.0
    %244 = vmatpush1.xpose.msra.mxu0 0.0
    %245 = vmatprep.subr.mxu0 0.0
    %246 = vmatpush1.xpose.msra.mxu0 0.0
    %247 = vmatprep.subr.mxu0 0.0
    %248 = vmatpush1.xpose.msra.mxu0 0.0
    %249 = vmatprep.subr.mxu0 0.0
    %250 = vmatpush1.xpose.msra.mxu0 0.0
    %251 = vmatprep.subr.mxu0 0.0
    %252 = vmatpush1.xpose.msra.mxu0 0.0
    %253 = vmatprep.subr.mxu0 0.0
    %254 = vmatpush1.xpose.msra.mxu0 0.0
    %255 = vmatprep.subr.mxu0 0.0
    %256 = vmatpush1.xpose.msra.mxu0 0.0
    %257 = vmatprep.subr.mxu0 0.0
    %258 = vmatpush1.xpose.msra.mxu0 0.0
    %259 = vmatprep.subr.mxu0 0.0
    %260 = vmatpush1.xpose.msra.mxu0 0.0
    %261 = vmatprep.subr.mxu0 0.0
    %262 = vmatpush1.xpose.msra.mxu0 0.0
    %263 = vmatprep.subr.mxu0 0.0
    %264 = vmatpush1.xpose.msra.mxu0 0.0
    %265 = vmatprep.subr.mxu0 0.0
    %266 = vmatpush1.xpose.msra.mxu0 0.0
    %267 = vmatprep.subr.mxu0 0.0
    %268 = vmatpush1.xpose.msra.mxu0 0.0
    %269 = vmatprep.subr.mxu0 0.0
    %270 = vmatpush1.xpose.msra.mxu0 0.0
    %271 = vmatprep.subr.mxu0 0.0
    %272 = vmatpush1.xpose.msra.mxu0 0.0
    %273 = vmatprep.subr.mxu0 0.0
    %274 = vmatpush1.xpose.msra.mxu0 0.0
    %275 = vmatprep.subr.mxu0 0.0
    %276 = vmatpush1.xpose.msra.mxu0 0.0
    %277 = vmatprep.subr.mxu0 0.0
    %278 = vmatpush1.xpose.msra.mxu0 0.0
    %279 = vmatprep.subr.mxu0 0.0
    %280 = vmatpush1.xpose.msra.mxu0 0.0
    %281 = vmatprep.subr.mxu0 0.0
    %282 = vmatpush1.xpose.msra.mxu0 0.0
    %283 = vmatprep.subr.mxu0 0.0
    %284 = vmatpush1.xpose.msra.mxu0 0.0
    %285 = vmatprep.subr.mxu0 0.0
    %286 = vmatpush1.xpose.msra.mxu0 0.0
    %287 = vmatprep.subr.mxu0 0.0
    %288 = vmatpush1.xpose.msra.mxu0 0.0
    %289 = vmatprep.subr.mxu0 0.0
    %290 = vmatpush1.xpose.msra.mxu0 0.0
    %291 = vmatprep.subr.mxu0 0.0
    %292 = vmatpush1.xpose.msra.mxu0 0.0
    %293 = vmatprep.subr.mxu0 0.0
    %294 = vmatpush1.xpose.msra.mxu0 0.0
    %295 = vmatprep.subr.mxu0 0.0
    %296 = vmatpush1.xpose.msra.mxu0 0.0
    %297 = vmatprep.subr.mxu0 0.0
    %298 = vmatpush1.xpose.msra.mxu0 0.0
    %299 = vmatprep.mubr.f32.mxu0 0.0
    %300 = vmatmul.mubr.f32.gmra.mrb[0].mxu0 %v208
    %v301 = vpop.f32.mrb[0].mxu0
    %v302 = vadd.f32 %v185, %v301
    %v303 = vpop.f32.mrb[0].mxu0
    %304 = vmatprep.mubr.f32.mxu0 0.0
    %305 = vmatmul.mubr.f32.gmra.mrb[0].mxu0 %v211
    %v306 = vpop.f32.mrb[0].mxu0
    %v307 = vadd.f32 %v186, %v306
    %v308 = vpop.f32.mrb[0].mxu0
    %309 = vmatprep.mubr.f32.mxu0 0.0
    %310 = vmatmul.mubr.f32.gmra.mrb[0].mxu0 %v214
    %v311 = vpop.f32.mrb[0].mxu0
    %v312 = vadd.f32 %v187, %v311
    %v313 = vpop.f32.mrb[0].mxu0
    %314 = vmatprep.mubr.f32.mxu0 0.0
    %315 = vmatmul.mubr.f32.gmra.mrb[0].mxu0 %v217
    %v316 = vpop.f32.mrb[0].mxu0
    %v317 = vadd.f32 %v188, %v316
    %v318 = vpop.f32.mrb[0].mxu0
    %319 = vmatprep.mubr.f32.mxu0 0.0
    %320 = vmatmul.mubr.f32.gmra.mrb[0].mxu0 %v220
    %v321 = vpop.f32.mrb[0].mxu0
    %v322 = vadd.f32 %v189, %v321
    %v323 = vpop.f32.mrb[0].mxu0
    %324 = vmatprep.mubr.f32.mxu0 0.0
    %325 = vmatmul.mubr.f32.gmra.mrb[0].mxu0 %v223
    %v326 = vpop.f32.mrb[0].mxu0
    %v327 = vadd.f32 %v190, %v326
    %v328 = vpop.f32.mrb[0].mxu0
    %329 = vmatprep.mubr.f32.mxu0 0.0
    %330 = vmatmul.mubr.f32.gmra.mrb[0].mxu0 %v226
    %v331 = vpop.f32.mrb[0].mxu0
    %v332 = vadd.f32 %v191, %v331
    %v333 = vpop.f32.mrb[0].mxu0
    %334 = vmatprep.mubr.f32.mxu0 0.0
    %335 = vmatmul.mubr.f32.gmra.mrb[0].mxu0 %v229
    %v336 = vpop.f32.mrb[0].mxu0
    %v337 = vadd.f32 %v192, %v336
    %v338 = vpop.f32.mrb[0].mxu0
    %339 = vdwg.mxu0
    %vm340 = vcmask 130048
    %v341 = vsel %vm340, %v302, -inf
    %342 = vmax.xlane.f32.xlu0 %v341
    %v343 = vpop.xlane.xlu0 %342
    %v344 = vsel %vm340, %v307, -inf
    %345 = vmax.xlane.f32.xlu0 %v344
    %v346 = vpop.xlane.xlu0 %345
    %v347 = vsel %vm340, %v312, -inf
    %348 = vmax.xlane.f32.xlu0 %v347
    %v349 = vpop.xlane.xlu0 %348
    %v350 = vsel %vm340, %v317, -inf
    %351 = vmax.xlane.f32.xlu0 %v350
    %v352 = vpop.xlane.xlu0 %351
    %v353 = vsel %vm340, %v322, -inf
    %354 = vmax.xlane.f32.xlu0 %v353
    %v355 = vpop.xlane.xlu0 %354
    %v356 = vsel %vm340, %v327, -inf
    %357 = vmax.xlane.f32.xlu0 %v356
    %v358 = vpop.xlane.xlu0 %357
    %v359 = vsel %vm340, %v332, -inf
    %360 = vmax.xlane.f32.xlu0 %v359
    %v361 = vpop.xlane.xlu0 %360
    %v362 = vsel %vm340, %v337, -inf
    %363 = vmax.xlane.f32.xlu0 %v362
    %v364 = vpop.xlane.xlu0 %363
    %v365 = vsub.f32 %v302, %v343
    %v366 = vsub.f32 %v307, %v346
    %v367 = vsub.f32 %v312, %v349
    %v368 = vsub.f32 %v317, %v352
    %v369 = vsub.f32 %v322, %v355
    %v370 = vsub.f32 %v327, %v358
    %v371 = vsub.f32 %v332, %v361
    %v372 = vsub.f32 %v337, %v364
    %v373 = vmul.f32 %v365, 1.442695
    %v374 = vpow.pop %v373
    %v375 = vmul.f32 %v366, 1.442695
    %v376 = vpow.pop %v375
    %v377 = vmul.f32 %v367, 1.442695
    %v378 = vpow.pop %v377
    %v379 = vmul.f32 %v368, 1.442695
    %v380 = vpow.pop %v379
    %v381 = vmul.f32 %v369, 1.442695
    %v382 = vpow.pop %v381
    %v383 = vmul.f32 %v370, 1.442695
    %v384 = vpow.pop %v383
    %v385 = vmul.f32 %v371, 1.442695
    %v386 = vpow.pop %v385
    %v387 = vmul.f32 %v372, 1.442695
    %v388 = vpow.pop %v387
    %v389 = vsel %vm340, %v374, 0.0
    %390 = vadd.xlane.f32.xlu0 %v389
    %v391 = vpop.xlane.xlu0 %390
    %v392 = vsel %vm340, %v376, 0.0
    %393 = vadd.xlane.f32.xlu0 %v392
    %v394 = vpop.xlane.xlu0 %393
    %v395 = vsel %vm340, %v378, 0.0
    %396 = vadd.xlane.f32.xlu0 %v395
    %v397 = vpop.xlane.xlu0 %396
    %v398 = vsel %vm340, %v380, 0.0
    %399 = vadd.xlane.f32.xlu0 %v398
    %v400 = vpop.xlane.xlu0 %399
    %v401 = vsel %vm340, %v382, 0.0
    %402 = vadd.xlane.f32.xlu0 %v401
    %v403 = vpop.xlane.xlu0 %402
    %v404 = vsel %vm340, %v384, 0.0
    %405 = vadd.xlane.f32.xlu0 %v404
    %v406 = vpop.xlane.xlu0 %405
    %v407 = vsel %vm340, %v386, 0.0
    %408 = vadd.xlane.f32.xlu0 %v407
    %v409 = vpop.xlane.xlu0 %408
    %v410 = vsel %vm340, %v388, 0.0
    %411 = vadd.xlane.f32.xlu0 %v410
    %v412 = vpop.xlane.xlu0 %411
    %v413 = vrcp.pop %v391
    %v414 = vmul.f32 %v374, %v413
    %v415 = vrcp.pop %v394
    %v416 = vmul.f32 %v376, %v415
    %v417 = vrcp.pop %v397
    %v418 = vmul.f32 %v378, %v417
    %v419 = vrcp.pop %v400
    %v420 = vmul.f32 %v380, %v419
    %v421 = vrcp.pop %v403
    %v422 = vmul.f32 %v382, %v421
    %v423 = vrcp.pop %v406
    %v424 = vmul.f32 %v384, %v423
    %v425 = vrcp.pop %v409
    %v426 = vmul.f32 %v386, %v425
    %v427 = vrcp.pop %v412
    %v428 = vmul.f32 %v388, %v427
    %429 = vrot.lane.b32.xlu0 %v169, 64
    %v430 = vpop.permute.xlu0 %429
    %431 = vrot.lane.b32.xlu0 %v174, 64
    %v432 = vpop.permute.xlu0 %431
    %v436 = vsel %vm340, %v414, 0
    %v439 = vsel %vm340, %v416, 0
    %v442 = vsel %vm340, %v418, 0
    %v445 = vsel %vm340, %v420, 0
    %v448 = vsel %vm340, %v422, 0
    %v451 = vsel %vm340, %v424, 0
    %v454 = vsel %vm340, %v426, 0
    %v457 = vsel %vm340, %v428, 0
    %459 = vmatprep.subr.mxu0 0.0
    %460 = vmatpush1.msra.mxu0 %v430
    %461 = vmatprep.subr.mxu0 0.0
    %462 = vmatpush1.msra.mxu0 %v432
    %463 = vmatprep.subr.mxu0 0.0
    %464 = vmatpush1.msra.mxu0 0.0
    %465 = vmatprep.subr.mxu0 0.0
    %466 = vmatpush1.msra.mxu0 0.0
    %467 = vmatprep.subr.mxu0 0.0
    %468 = vmatpush1.msra.mxu0 0.0
    %469 = vmatprep.subr.mxu0 0.0
    %470 = vmatpush1.msra.mxu0 0.0
    %471 = vmatprep.subr.mxu0 0.0
    %472 = vmatpush1.msra.mxu0 0.0
    %473 = vmatprep.subr.mxu0 0.0
    %474 = vmatpush1.msra.mxu0 0.0
    %475 = vmatprep.subr.mxu0 0.0
    %476 = vmatpush1.msra.mxu0 0.0
    %477 = vmatprep.subr.mxu0 0.0
    %478 = vmatpush1.msra.mxu0 0.0
    %479 = vmatprep.subr.mxu0 0.0
    %480 = vmatpush1.msra.mxu0 0.0
    %481 = vmatprep.subr.mxu0 0.0
    %482 = vmatpush1.msra.mxu0 0.0
    %483 = vmatprep.subr.mxu0 0.0
    %484 = vmatpush1.msra.mxu0 0.0
    %485 = vmatprep.subr.mxu0 0.0
    %486 = vmatpush1.msra.mxu0 0.0
    %487 = vmatprep.subr.mxu0 0.0
    %488 = vmatpush1.msra.mxu0 0.0
    %489 = vmatprep.subr.mxu0 0.0
    %490 = vmatpush1.msra.mxu0 0.0
    %491 = vmatprep.subr.mxu0 0.0
    %492 = vmatpush1.msra.mxu0 0.0
    %493 = vmatprep.subr.mxu0 0.0
    %494 = vmatpush1.msra.mxu0 0.0
    %495 = vmatprep.subr.mxu0 0.0
    %496 = vmatpush1.msra.mxu0 0.0
    %497 = vmatprep.subr.mxu0 0.0
    %498 = vmatpush1.msra.mxu0 0.0
    %499 = vmatprep.subr.mxu0 0.0
    %500 = vmatpush1.msra.mxu0 0.0
    %501 = vmatprep.subr.mxu0 0.0
    %502 = vmatpush1.msra.mxu0 0.0
    %503 = vmatprep.subr.mxu0 0.0
    %504 = vmatpush1.msra.mxu0 0.0
    %505 = vmatprep.subr.mxu0 0.0
    %506 = vmatpush1.msra.mxu0 0.0
    %507 = vmatprep.subr.mxu0 0.0
    %508 = vmatpush1.msra.mxu0 0.0
    %509 = vmatprep.subr.mxu0 0.0
    %510 = vmatpush1.msra.mxu0 0.0
    %511 = vmatprep.subr.mxu0 0.0
    %512 = vmatpush1.msra.mxu0 0.0
    %513 = vmatprep.subr.mxu0 0.0
    %514 = vmatpush1.msra.mxu0 0.0
    %515 = vmatprep.subr.mxu0 0.0
    %516 = vmatpush1.msra.mxu0 0.0
    %517 = vmatprep.subr.mxu0 0.0
    %518 = vmatpush1.msra.mxu0 0.0
    %519 = vmatprep.subr.mxu0 0.0
    %520 = vmatpush1.msra.mxu0 0.0
    %521 = vmatprep.subr.mxu0 0.0
    %522 = vmatpush1.msra.mxu0 0.0
    %523 = vmatprep.mubr.f32.mxu0 0.0
    %524 = vmatmul.mubr.f32.gmra.mrb[0].mxu0 %v436
    %v525 = vpop.f32.mrb[0].mxu0
    %v526 = vadd.f32 0.0, %v525
    %v527 = vpop.f32.mrb[0].mxu0
    %528 = vmatprep.mubr.f32.mxu0 0.0
    %529 = vmatmul.mubr.f32.gmra.mrb[0].mxu0 %v439
    %v530 = vpop.f32.mrb[0].mxu0
    %v531 = vadd.f32 0.0, %v530
    %v532 = vpop.f32.mrb[0].mxu0
    %533 = vmatprep.mubr.f32.mxu0 0.0
    %534 = vmatmul.mubr.f32.gmra.mrb[0].mxu0 %v442
    %v535 = vpop.f32.mrb[0].mxu0
    %v536 = vadd.f32 0.0, %v535
    %v537 = vpop.f32.mrb[0].mxu0
    %538 = vmatprep.mubr.f32.mxu0 0.0
    %539 = vmatmul.mubr.f32.gmra.mrb[0].mxu0 %v445
    %v540 = vpop.f32.mrb[0].mxu0
    %v541 = vadd.f32 0.0, %v540
    %v542 = vpop.f32.mrb[0].mxu0
    %543 = vmatprep.mubr.f32.mxu0 0.0
    %544 = vmatmul.mubr.f32.gmra.mrb[0].mxu0 %v448
    %v545 = vpop.f32.mrb[0].mxu0
    %v546 = vadd.f32 0.0, %v545
    %v547 = vpop.f32.mrb[0].mxu0
    %548 = vmatprep.mubr.f32.mxu0 0.0
    %549 = vmatmul.mubr.f32.gmra.mrb[0].mxu0 %v451
    %v550 = vpop.f32.mrb[0].mxu0
    %v551 = vadd.f32 0.0, %v550
    %v552 = vpop.f32.mrb[0].mxu0
    %553 = vmatprep.mubr.f32.mxu0 0.0
    %554 = vmatmul.mubr.f32.gmra.mrb[0].mxu0 %v454
    %v555 = vpop.f32.mrb[0].mxu0
    %v556 = vadd.f32 0.0, %v555
    %v557 = vpop.f32.mrb[0].mxu0
    %558 = vmatprep.mubr.f32.mxu0 0.0
    %559 = vmatmul.mubr.f32.gmra.mrb[0].mxu0 %v457
    %v560 = vpop.f32.mrb[0].mxu0
    %v561 = vadd.f32 0.0, %v560
    %v562 = vpop.f32.mrb[0].mxu0
    %563 = vdwg.mxu0
    %v564 = vmul.f32 %v526, %v177
    %v565 = vmul.f32 %v531, %v178
    %v566 = vmul.f32 %v536, %v179
    %v567 = vmul.f32 %v541, %v180
    %v568 = vmul.f32 %v546, %v181
    %v569 = vmul.f32 %v551, %v182
    %v570 = vmul.f32 %v556, %v183
    %v571 = vmul.f32 %v561, %v184
    %v572 = vadd.f32 %v564, %v566
    %v573 = vadd.f32 %v565, %v567
    %v574 = vadd.f32 %v572, %v568
    %v575 = vadd.f32 %v573, %v569
    %v576 = vadd.f32 %v574, %v570
    %v577 = vadd.f32 %v575, %v571
    %v578 = vld [vmem:[#allocation5 + $0x20] sm:$0xff]
    %v579 = vld [vmem:[#allocation5 + $0x28] sm:$0xff]
    %v580 = vld [vmem:[#allocation5 + $0x30] sm:$0xff]
    %v581 = vld [vmem:[#allocation5 + $0x38] sm:$0xff]
    %v582 = vld [vmem:[#allocation5 + $0xe5] sm:$0x1]
    %v583 = vlaneseq
    %v584 = vshrl.u32 %v583, 7
    %v585 = vsub.s32 0, %v584
    %v586 = vrot.slane %v582, %v585
    %v588 = vsel %vm44, %v576, 0
    %v591 = vsel %vm44, %v577, 0
    %593 = vmatprep.subr.mxu0 0.0
    %594 = vmatpush1.msra.mxu0 %v578
    %595 = vmatprep.subr.mxu0 0.0
    %596 = vmatpush1.msra.mxu0 %v579
    %597 = vmatprep.subr.mxu0 0.0
    %598 = vmatpush1.msra.mxu0 %v580
    %599 = vmatprep.subr.mxu0 0.0
    %600 = vmatpush1.msra.mxu0 %v581
    %601 = vmatprep.subr.mxu0 0.0
    %602 = vmatpush1.msra.mxu0 0.0
    %603 = vmatprep.subr.mxu0 0.0
    %604 = vmatpush1.msra.mxu0 0.0
    %605 = vmatprep.subr.mxu0 0.0
    %606 = vmatpush1.msra.mxu0 0.0
    %607 = vmatprep.subr.mxu0 0.0
    %608 = vmatpush1.msra.mxu0 0.0
    %609 = vmatprep.subr.mxu0 0.0
    %610 = vmatpush1.msra.mxu0 0.0
    %611 = vmatprep.subr.mxu0 0.0
    %612 = vmatpush1.msra.mxu0 0.0
    %613 = vmatprep.subr.mxu0 0.0
    %614 = vmatpush1.msra.mxu0 0.0
    %615 = vmatprep.subr.mxu0 0.0
    %616 = vmatpush1.msra.mxu0 0.0
    %617 = vmatprep.subr.mxu0 0.0
    %618 = vmatpush1.msra.mxu0 0.0
    %619 = vmatprep.subr.mxu0 0.0
    %620 = vmatpush1.msra.mxu0 0.0
    %621 = vmatprep.subr.mxu0 0.0
    %622 = vmatpush1.msra.mxu0 0.0
    %623 = vmatprep.subr.mxu0 0.0
    %624 = vmatpush1.msra.mxu0 0.0
    %625 = vmatprep.subr.mxu0 0.0
    %626 = vmatpush1.msra.mxu0 0.0
    %627 = vmatprep.subr.mxu0 0.0
    %628 = vmatpush1.msra.mxu0 0.0
    %629 = vmatprep.subr.mxu0 0.0
    %630 = vmatpush1.msra.mxu0 0.0
    %631 = vmatprep.subr.mxu0 0.0
    %632 = vmatpush1.msra.mxu0 0.0
    %633 = vmatprep.subr.mxu0 0.0
    %634 = vmatpush1.msra.mxu0 0.0
    %635 = vmatprep.subr.mxu0 0.0
    %636 = vmatpush1.msra.mxu0 0.0
    %637 = vmatprep.subr.mxu0 0.0
    %638 = vmatpush1.msra.mxu0 0.0
    %639 = vmatprep.subr.mxu0 0.0
    %640 = vmatpush1.msra.mxu0 0.0
    %641 = vmatprep.subr.mxu0 0.0
    %642 = vmatpush1.msra.mxu0 0.0
    %643 = vmatprep.subr.mxu0 0.0
    %644 = vmatpush1.msra.mxu0 0.0
    %645 = vmatprep.subr.mxu0 0.0
    %646 = vmatpush1.msra.mxu0 0.0
    %647 = vmatprep.subr.mxu0 0.0
    %648 = vmatpush1.msra.mxu0 0.0
    %649 = vmatprep.subr.mxu0 0.0
    %650 = vmatpush1.msra.mxu0 0.0
    %651 = vmatprep.subr.mxu0 0.0
    %652 = vmatpush1.msra.mxu0 0.0
    %653 = vmatprep.subr.mxu0 0.0
    %654 = vmatpush1.msra.mxu0 0.0
    %655 = vmatprep.subr.mxu0 0.0
    %656 = vmatpush1.msra.mxu0 0.0
    %657 = vmatprep.mubr.f32.mxu0 0.0
    %658 = vmatmul.mubr.f32.gmra.mrb[0].mxu0 %v588
    %v659 = vpop.f32.mrb[0].mxu0
    %v660 = vadd.f32 %v586, %v659
    %v661 = vpop.f32.mrb[0].mxu0
    %662 = vmatprep.mubr.f32.mxu0 0.0
    %663 = vmatmul.mubr.f32.gmra.mrb[0].mxu0 %v591
    %v664 = vpop.f32.mrb[0].mxu0
    %v665 = vadd.f32 %v586, %v664
    %v666 = vpop.f32.mrb[0].mxu0
    %667 = vdwg.mxu0
    %v668 = vadd.f32 %v40, %v660
    %v669 = vadd.f32 %v41, %v665
    %v670 = vld [vmem:[#allocation5 + $0xe2] sm:$0x1]
    %v671 = vld [vmem:[#allocation5 + $0xe3] sm:$0x1]
    %v672 = vsel %vm44, %v668, 0.0
    %673 = vadd.xlane.f32.xlu0 %v672
    %v674 = vpop.xlane.xlu0 %673
    %v675 = vsel %vm44, %v669, 0.0
    %676 = vadd.xlane.f32.xlu0 %v675
    %v677 = vpop.xlane.xlu0 %676
    %v678 = vmul.f32 %v668, %v668
    %v679 = vmul.f32 %v669, %v669
    %v680 = vsel %vm44, %v678, 0.0
    %681 = vadd.xlane.f32.xlu0 %v680
    %v682 = vpop.xlane.xlu0 %681
    %v683 = vsel %vm44, %v679, 0.0
    %684 = vadd.xlane.f32.xlu0 %v683
    %v685 = vpop.xlane.xlu0 %684
    %v686 = vmul.f32 %v674, 0.03125
    %v687 = vmul.f32 %v677, 0.03125
    %v688 = vmul.f32 %v682, 0.03125
    %v689 = vmul.f32 %v685, 0.03125
    %v690 = vmul.f32 %v686, %v686
    %v691 = vmul.f32 %v687, %v687
    %v692 = vsub.f32 %v688, %v690
    %v693 = vsub.f32 %v689, %v691
    %v694 = vsub.f32 %v668, %v686
    %v695 = vsub.f32 %v669, %v687
    %v696 = vadd.f32 %v692, 1e-05
    %v697 = vadd.f32 %v693, 1e-05
    %v698 = vrsqrt.pop %v696
    %v699 = vrsqrt.pop %v697
    %v700 = vmul.f32 %v694, %v698
    %v701 = vmul.f32 %v695, %v699
    %v702 = vlaneseq
    %v703 = vshrl.u32 %v702, 7
    %v704 = vsub.s32 0, %v703
    %v705 = vrot.slane %v670, %v704
    %v706 = vmul.f32 %v700, %v705
    %v707 = vmul.f32 %v701, %v705
    %v708 = vlaneseq
    %v709 = vshrl.u32 %v708, 7
    %v710 = vsub.s32 0, %v709
    %v711 = vrot.slane %v671, %v710
    %v712 = vadd.f32 %v706, %v711
    %v713 = vadd.f32 %v707, %v711
    %v714 = vld [vmem:[#allocation5 + $0x40] sm:$0xff]
    %v715 = vld [vmem:[#allocation5 + $0x48] sm:$0xff]
    %v716 = vld [vmem:[#allocation5 + $0x50] sm:$0xff]
    %v717 = vld [vmem:[#allocation5 + $0x58] sm:$0xff]
    %v718 = vld [vmem:[#allocation5 + $0xe6] sm:$0x1]
    %v719 = vlaneseq
    %v720 = vshrl.u32 %v719, 7
    %v721 = vsub.s32 0, %v720
    %v722 = vrot.slane %v718, %v721
    %v724 = vsel %vm44, %v712, 0
    %v727 = vsel %vm44, %v713, 0
    %729 = vmatprep.subr.mxu0 0.0
    %730 = vmatpush1.msra.mxu0 %v714
    %731 = vmatprep.subr.mxu0 0.0
    %732 = vmatpush1.msra.mxu0 %v715
    %733 = vmatprep.subr.mxu0 0.0
    %734 = vmatpush1.msra.mxu0 %v716
    %735 = vmatprep.subr.mxu0 0.0
    %736 = vmatpush1.msra.mxu0 %v717
    %737 = vmatprep.subr.mxu0 0.0
    %738 = vmatpush1.msra.mxu0 0.0
    %739 = vmatprep.subr.mxu0 0.0
    %740 = vmatpush1.msra.mxu0 0.0
    %741 = vmatprep.subr.mxu0 0.0
    %742 = vmatpush1.msra.mxu0 0.0
    %743 = vmatprep.subr.mxu0 0.0
    %744 = vmatpush1.msra.mxu0 0.0
    %745 = vmatprep.subr.mxu0 0.0
    %746 = vmatpush1.msra.mxu0 0.0
    %747 = vmatprep.subr.mxu0 0.0
    %748 = vmatpush1.msra.mxu0 0.0
    %749 = vmatprep.subr.mxu0 0.0
    %750 = vmatpush1.msra.mxu0 0.0
    %751 = vmatprep.subr.mxu0 0.0
    %752 = vmatpush1.msra.mxu0 0.0
    %753 = vmatprep.subr.mxu0 0.0
    %754 = vmatpush1.msra.mxu0 0.0
    %755 = vmatprep.subr.mxu0 0.0
    %756 = vmatpush1.msra.mxu0 0.0
    %757 = vmatprep.subr.mxu0 0.0
    %758 = vmatpush1.msra.mxu0 0.0
    %759 = vmatprep.subr.mxu0 0.0
    %760 = vmatpush1.msra.mxu0 0.0
    %761 = vmatprep.subr.mxu0 0.0
    %762 = vmatpush1.msra.mxu0 0.0
    %763 = vmatprep.subr.mxu0 0.0
    %764 = vmatpush1.msra.mxu0 0.0
    %765 = vmatprep.subr.mxu0 0.0
    %766 = vmatpush1.msra.mxu0 0.0
    %767 = vmatprep.subr.mxu0 0.0
    %768 = vmatpush1.msra.mxu0 0.0
    %769 = vmatprep.subr.mxu0 0.0
    %770 = vmatpush1.msra.mxu0 0.0
    %771 = vmatprep.subr.mxu0 0.0
    %772 = vmatpush1.msra.mxu0 0.0
    %773 = vmatprep.subr.mxu0 0.0
    %774 = vmatpush1.msra.mxu0 0.0
    %775 = vmatprep.subr.mxu0 0.0
    %776 = vmatpush1.msra.mxu0 0.0
    %777 = vmatprep.subr.mxu0 0.0
    %778 = vmatpush1.msra.mxu0 0.0
    %779 = vmatprep.subr.mxu0 0.0
    %780 = vmatpush1.msra.mxu0 0.0
    %781 = vmatprep.subr.mxu0 0.0
    %782 = vmatpush1.msra.mxu0 0.0
    %783 = vmatprep.subr.mxu0 0.0
    %784 = vmatpush1.msra.mxu0 0.0
    %785 = vmatprep.subr.mxu0 0.0
    %786 = vmatpush1.msra.mxu0 0.0
    %787 = vmatprep.subr.mxu0 0.0
    %788 = vmatpush1.msra.mxu0 0.0
    %789 = vmatprep.subr.mxu0 0.0
    %790 = vmatpush1.msra.mxu0 0.0
    %791 = vmatprep.subr.mxu0 0.0
    %792 = vmatpush1.msra.mxu0 0.0
    %793 = vmatprep.mubr.f32.mxu0 0.0
    %794 = vmatmul.mubr.f32.gmra.mrb[0].mxu0 %v724
    %v795 = vpop.f32.mrb[0].mxu0
    %v796 = vadd.f32 %v722, %v795
    %v797 = vpop.f32.mrb[0].mxu0
    %798 = vmatprep.mubr.f32.mxu0 0.0
    %799 = vmatmul.mubr.f32.gmra.mrb[0].mxu0 %v727
    %v800 = vpop.f32.mrb[0].mxu0
    %v801 = vadd.f32 %v722, %v800
    %v802 = vpop.f32.mrb[0].mxu0
    %803 = vdwg.mxu0
    %v804 = vmul.f32 %v796, 1.702
    %v805 = vmul.f32 %v801, 1.702
    %v806 = vxor.u32 %v804, 2147483648
    %v807 = vxor.u32 %v805, 2147483648
    %v808 = vmul.f32 %v806, 1.442695
    %v809 = vpow.pop %v808
    %v810 = vmul.f32 %v807, 1.442695
    %v811 = vpow.pop %v810
    %v812 = vadd.f32 %v809, 1.0
    %v813 = vadd.f32 %v811, 1.0
    %v814 = vrcp.pop %v812
    %v815 = vmul.f32 1.0, %v814
    %v816 = vrcp.pop %v813
    %v817 = vmul.f32 1.0, %v816
    %v818 = vmul.f32 %v796, %v815
    %v819 = vmul.f32 %v801, %v817
    %v820 = vld [vmem:[#allocation5 + $0x60] sm:$0xff]
    %v821 = vld [vmem:[#allocation5 + $0x68] sm:$0xff]
    %v822 = vld [vmem:[#allocation5 + $0x70] sm:$0xff]
    %v823 = vld [vmem:[#allocation5 + $0x78] sm:$0xff]
    %v824 = vld [vmem:[#allocation5 + $0x80] sm:$0xff]
    %v825 = vld [vmem:[#allocation5 + $0x88] sm:$0xff]
    %v826 = vld [vmem:[#allocation5 + $0x90] sm:$0xff]
    %v827 = vld [vmem:[#allocation5 + $0x98] sm:$0xff]
    %v828 = vld [vmem:[#allocation5 + $0xa0] sm:$0xff]
    %v829 = vld [vmem:[#allocation5 + $0xa8] sm:$0xff]
    %v830 = vld [vmem:[#allocation5 + $0xb0] sm:$0xff]
    %v831 = vld [vmem:[#allocation5 + $0xb8] sm:$0xff]
    %v832 = vld [vmem:[#allocation5 + $0xc0] sm:$0xff]
    %v833 = vld [vmem:[#allocation5 + $0xc8] sm:$0xff]
    %v834 = vld [vmem:[#allocation5 + $0xd0] sm:$0xff]
    %v835 = vld [vmem:[#allocation5 + $0xd8] sm:$0xff]
    %v836 = vld [vmem:[#allocation5 + $0xe7] sm:$0x1]
    %v837 = vlaneseq
    %v838 = vshrl.u32 %v837, 7
    %v839 = vsub.s32 0, %v838
    %v840 = vrot.slane %v836, %v839
    %841 = vmatprep.subr.mxu0 0.0
    %842 = vmatpush1.msra.mxu0 %v820
    %843 = vmatprep.subr.mxu0 0.0
    %844 = vmatpush1.msra.mxu0 %v821
    %845 = vmatprep.subr.mxu0 0.0
    %846 = vmatpush1.msra.mxu0 %v822
    %847 = vmatprep.subr.mxu0 0.0
    %848 = vmatpush1.msra.mxu0 %v823
    %849 = vmatprep.subr.mxu0 0.0
    %850 = vmatpush1.msra.mxu0 %v824
    %851 = vmatprep.subr.mxu0 0.0
    %852 = vmatpush1.msra.mxu0 %v825
    %853 = vmatprep.subr.mxu0 0.0
    %854 = vmatpush1.msra.mxu0 %v826
    %855 = vmatprep.subr.mxu0 0.0
    %856 = vmatpush1.msra.mxu0 %v827
    %857 = vmatprep.subr.mxu0 0.0
    %858 = vmatpush1.msra.mxu0 %v828
    %859 = vmatprep.subr.mxu0 0.0
    %860 = vmatpush1.msra.mxu0 %v829
    %861 = vmatprep.subr.mxu0 0.0
    %862 = vmatpush1.msra.mxu0 %v830
    %863 = vmatprep.subr.mxu0 0.0
    %864 = vmatpush1.msra.mxu0 %v831
    %865 = vmatprep.subr.mxu0 0.0
    %866 = vmatpush1.msra.mxu0 %v832
    %867 = vmatprep.subr.mxu0 0.0
    %868 = vmatpush1.msra.mxu0 %v833
    %869 = vmatprep.subr.mxu0 0.0
    %870 = vmatpush1.msra.mxu0 %v834
    %871 = vmatprep.subr.mxu0 0.0
    %872 = vmatpush1.msra.mxu0 %v835
    %873 = vmatprep.subr.mxu0 0.0
    %874 = vmatpush1.msra.mxu0 0.0
    %875 = vmatprep.subr.mxu0 0.0
    %876 = vmatpush1.msra.mxu0 0.0
    %877 = vmatprep.subr.mxu0 0.0
    %878 = vmatpush1.msra.mxu0 0.0
    %879 = vmatprep.subr.mxu0 0.0
    %880 = vmatpush1.msra.mxu0 0.0
    %881 = vmatprep.subr.mxu0 0.0
    %882 = vmatpush1.msra.mxu0 0.0
    %883 = vmatprep.subr.mxu0 0.0
    %884 = vmatpush1.msra.mxu0 0.0
    %885 = vmatprep.subr.mxu0 0.0
    %886 = vmatpush1.msra.mxu0 0.0
    %887 = vmatprep.subr.mxu0 0.0
    %888 = vmatpush1.msra.mxu0 0.0
    %889 = vmatprep.subr.mxu0 0.0
    %890 = vmatpush1.msra.mxu0 0.0
    %891 = vmatprep.subr.mxu0 0.0
    %892 = vmatpush1.msra.mxu0 0.0
    %893 = vmatprep.subr.mxu0 0.0
    %894 = vmatpush1.msra.mxu0 0.0
    %895 = vmatprep.subr.mxu0 0.0
    %896 = vmatpush1.msra.mxu0 0.0
    %897 = vmatprep.subr.mxu0 0.0
    %898 = vmatpush1.msra.mxu0 0.0
    %899 = vmatprep.subr.mxu0 0.0
    %900 = vmatpush1.msra.mxu0 0.0
    %901 = vmatprep.subr.mxu0 0.0
    %902 = vmatpush1.msra.mxu0 0.0
    %903 = vmatprep.subr.mxu0 0.0
    %904 = vmatpush1.msra.mxu0 0.0
    %905 = vmatprep.mubr.f32.mxu0 0.0
    %906 = vmatmul.mubr.f32.gmra.mrb[0].mxu0 %v818
    %v907 = vpop.f32.mrb[0].mxu0
    %v908 = vadd.f32 %v840, %v907
    %v909 = vpop.f32.mrb[0].mxu0
    %910 = vmatprep.mubr.f32.mxu0 0.0
    %911 = vmatmul.mubr.f32.gmra.mrb[0].mxu0 %v819
    %v912 = vpop.f32.mrb[0].mxu0
    %v913 = vadd.f32 %v840, %v912
    %v914 = vpop.f32.mrb[0].mxu0
    %915 = vdwg.mxu0
    %v916 = vadd.f32 %v668, %v908
    %v917 = vadd.f32 %v669, %v913
    %918 = vst.msk [vmem:[#allocation7] sm:$0xff] %vm44, %v916
    %919 = vst.msk [vmem:[#allocation7 + $0x8] sm:$0xff] %vm44, %v917
    // Predicated region
    $region18: #{tpu_custom_call.1} parent=1 // pred_check
      _
    $region19: #{tpu_custom_call.1} parent=1 // pred_check_branch
      %921 = sbr.rel (0) target = $region21
    $region20: #{tpu_custom_call.1} parent=1 // pred_region
      %s923 = ssub.s32 256, 256
      %924 = vsyncadd [#allocation4], %s923
      %s925 = sshll.u32 [#allocation7], 4
      %s926 = int_to_ptr.vmem [resolvable:$true] %s925
      %931 = dma.vmem_to_hbm [thread:$0]  %s926, 256, %s2, [#allocation4], 128, 128, 8
    $region21: #{tpu_custom_call.1} parent=1 // pred_fallthru
      _
    // Predicated region
    $region22: #{tpu_custom_call.1} parent=1 // pred_check
      _
    $region23: #{tpu_custom_call.1} parent=1 // pred_check_branch
      %933 = sbr.rel (0) target = $region25
    $region24: #{tpu_custom_call.1} parent=1 // pred_region
      %934 = dma.done [#allocation4], 256
    $region25: #{tpu_custom_call.1} parent=1 // pred_fallthru
      _
    %935 = vsyncpa [#allocation3], 1
    %936 = vsyncpa [#allocation6], 1
    %937 = vsyncpa [#allocation4], 1

</llo_original>
